<compile_context>
chip_gen: v5e
topology: v5e:2x2
jax: 0.10.0
libtpu: 0.0.40
codegen_flags: <defaults>
</compile_context>

<pallas_src>
import functools

import jax
import jax.numpy as jnp
from jax.experimental import pallas as pl
from jax.experimental.pallas import tpu as pltpu


# ----------------------------------------------------------------------------
# Pallas kernel: encode -> reparameterize -> decode, all operands in VMEM.
#   yx_ref : (B, W)      bf16   [y | x | 0]      (W = padded uniform lane width)
#   eps_ref: (B, z_dim)  f32
#   w_ref  : (9, W, W)   bf16   zero-padded weight blocks (see pack_vae_params)
#   b_ref  : (8, W)      f32    zero-padded biases, one row per Linear layer
# Outputs:
#   zhead_out: (B, W) f32  [z_mu | z_logvar(clamped) | 0]
#   z_out    : (B, z_dim) f32  reparameterized samples
#   yhead_out: (B, W) f32  [y_logvar(clamped) | y_pred | 0]
# ----------------------------------------------------------------------------
def _vae_kernel(yx_ref, eps_ref, w_ref, b_ref, zhead_out, z_out, yhead_out):
    f32 = jnp.float32
    bf16 = jnp.bfloat16
    dot = functools.partial(jnp.dot, preferred_element_type=f32)

    z_dim = eps_ref.shape[1]

    yx = yx_ref[...]          # (B, W) bf16
    bias = b_ref[...]         # (8, W) f32

    # ---- encode(cat([y, x], dim=1)) : single dot per layer, fused mu|logvar head
    h1 = jnp.maximum(dot(yx, w_ref[0]) + bias[0:1], 0.0)
    h2 = jnp.maximum(dot(h1.astype(bf16), w_ref[1]) + bias[1:2], 0.0)
    h3 = jnp.maximum(dot(h2.astype(bf16), w_ref[2]) + bias[2:3], 0.0)
    zh = dot(h3.astype(bf16), w_ref[3]) + bias[3:4]      # (B, W): [mu | logvar | 0]

    # clamp only the logvar columns (z_dim <= col < 2*z_dim) via an iota mask
    col = jax.lax.broadcasted_iota(jnp.int32, zh.shape, 1)
    zh = jnp.where((col >= z_dim) & (col < 2 * z_dim),
                   jnp.clip(zh, -5.0, 2.0), zh)

    # ---- reparameterize: z = mu + eps * exp(logvar)  (matches the torch code:
    #      it scales eps by the *variance*, not the std)
    z_mu = zh[:, :z_dim]
    z_lv = zh[:, z_dim:2 * z_dim]
    z = z_mu + eps_ref[...] * jnp.exp(z_lv)              # (B, z_dim) f32

    # ---- decode(cat([z, x], dim=1)) : z path + x path (x reused from yx via a
    #      weight block whose y-rows are zero), fused y_logvar|y_pred head
    w5z = w_ref[4][:z_dim, :]                            # (z_dim, W) bf16
    d1 = jnp.maximum(dot(z.astype(bf16), w5z) + dot(yx, w_ref[5]) + bias[4:5], 0.0)
    d2 = jnp.maximum(dot(d1.astype(bf16), w_ref[6]) + bias[5:6], 0.0)
    d3 = jnp.maximum(dot(d2.astype(bf16), w_ref[7]) + bias[6:7], 0.0)
    yh = dot(d3.astype(bf16), w_ref[8]) + bias[7:8]      # (B, W): [y_logvar | y_pred | 0]

    # clamp only column 0 (y_logvar)
    yh = jnp.where(col == 0, jnp.clip(yh, -5.0, 2.0), yh)

    zhead_out[...] = zh
    z_out[...] = z
    yhead_out[...] = yh


# ----------------------------------------------------------------------------
# Wrapper: packs the encoder input, runs the kernel, splits the fused heads.
# Returns (y_pred, y_logvar, z_mu, z_logvar, z_samples) like VAE.forward(x, y).
# ----------------------------------------------------------------------------
@jax.jit
def vae_forward_pallas(x, y, eps, w_all, b_all):
    B, s_dim = x.shape
    input_dim = y.shape[1]
    z_dim = eps.shape[1]
    W = w_all.shape[-1]

    # Pre-concatenate [y | x] and zero-pad to the uniform lane width W (bf16: dot-only).
    yx = jnp.zeros((B, W), jnp.float32)
    yx = yx.at[:, :input_dim].set(y)
    yx = yx.at[:, input_dim:input_dim + s_dim].set(x)
    yx = yx.astype(jnp.bfloat16)

    vmem = pl.BlockSpec(memory_space=pltpu.MemorySpace.VMEM)
    out_shape = (
        jax.ShapeDtypeStruct((B, W), jnp.float32),       # [z_mu | z_logvar | 0]
        jax.ShapeDtypeStruct((B, z_dim), jnp.float32),   # z_samples
        jax.ShapeDtypeStruct((B, W), jnp.float32),       # [y_logvar | y_pred | 0]
    )

    zhead, z_samples, yhead = pl.pallas_call(
        _vae_kernel,
        out_shape=out_shape,
        in_specs=[vmem, vmem, vmem, vmem],
        out_specs=(vmem, vmem, vmem),
    )(yx, eps, w_all, b_all)

    # Cheap XLA-side head splits (wrapper-side slicing per perf feedback).
    z_mu = zhead[:, :z_dim]
    z_logvar = zhead[:, z_dim:2 * z_dim]
    y_logvar = yhead[:, 0:1]
    y_pred = yhead[:, 1:input_dim + 1]
    return y_pred, y_logvar, z_mu, z_logvar, z_samples


# ----------------------------------------------------------------------------
# Parameter construction (PyTorch nn.Linear default init) and packing.
# Weights stored pre-transposed as (in_features, out_features); biases 1-D.
# ----------------------------------------------------------------------------
def _linear_params(key, fan_in, fan_out):
    kw, kb = jax.random.split(key)
    bound = 1.0 / (fan_in ** 0.5)
    w = jax.random.uniform(kw, (fan_in, fan_out), jnp.float32, -bound, bound)
    b = jax.random.uniform(kb, (fan_out,), jnp.float32, -bound, bound)
    return w, b


def make_vae_params(key, input_dim, z_dim, s_dim, hidden_dim):
    h, h2, h4 = hidden_dim, hidden_dim // 2, hidden_dim // 4
    keys = jax.random.split(key, 8)
    raw = {}
    raw["w1"], raw["b1"] = _linear_params(keys[0], input_dim + s_dim, h)
    raw["w2"], raw["b2"] = _linear_params(keys[1], h, h2)
    raw["w3"], raw["b3"] = _linear_params(keys[2], h2, h4)
    raw["w4"], raw["b4"] = _linear_params(keys[3], h4, 2 * z_dim)      # fused mu|logvar
    raw["w5"], raw["b5"] = _linear_params(keys[4], z_dim + s_dim, h4)
    raw["w6"], raw["b6"] = _linear_params(keys[5], h4, h2)
    raw["w7"], raw["b7"] = _linear_params(keys[6], h2, h)
    raw["w8"], raw["b8"] = _linear_params(keys[7], h, input_dim + 1)   # fused logvar|pred
    return raw


def pack_vae_params(raw, input_dim, z_dim, s_dim, hidden_dim):
    """Pack all weights into one (9, W, W) bf16 tensor and biases into (8, W) f32."""
    h, h2, h4 = hidden_dim, hidden_dim // 2, hidden_dim // 4
    din = input_dim + s_dim
    W = int(max(din, h, 2 * z_dim, input_dim + 1, z_dim + s_dim))

    w_all = jnp.zeros((9, W, W), jnp.float32)
    w_all = w_all.at[0, :din, :h].set(raw["w1"])
    w_all = w_all.at[1, :h, :h2].set(raw["w2"])
    w_all = w_all.at[2, :h2, :h4].set(raw["w3"])
    w_all = w_all.at[3, :h4, :2 * z_dim].set(raw["w4"])
    w_all = w_all.at[4, :z_dim, :h4].set(raw["w5"][:z_dim])            # z rows of w5
    # x rows of w5, placed so that the padded [y | x] input hits them directly:
    w_all = w_all.at[5, input_dim:input_dim + s_dim, :h4].set(raw["w5"][z_dim:])
    w_all = w_all.at[6, :h4, :h2].set(raw["w6"])
    w_all = w_all.at[7, :h2, :h].set(raw["w7"])
    w_all = w_all.at[8, :h, :input_dim + 1].set(raw["w8"])
    w_all = w_all.astype(jnp.bfloat16)

    b_all = jnp.zeros((8, W), jnp.float32)
    b_all = b_all.at[0, :h].set(raw["b1"])
    b_all = b_all.at[1, :h2].set(raw["b2"])
    b_all = b_all.at[2, :h4].set(raw["b3"])
    b_all = b_all.at[3, :2 * z_dim].set(raw["b4"])
    b_all = b_all.at[4, :h4].set(raw["b5"])
    b_all = b_all.at[5, :h2].set(raw["b6"])
    b_all = b_all.at[6, :h].set(raw["b7"])
    b_all = b_all.at[7, :input_dim + 1].set(raw["b8"])
    return w_all, b_all


# ----------------------------------------------------------------------------
# Pure-JAX reference mirroring the kernel's bf16 matmul inputs / f32 accumulation.
# Uses the ORIGINAL unpacked weights and torch-style cat/split, so it validates
# both the packing and the kernel math.
# ----------------------------------------------------------------------------
def vae_forward_ref(x, y, eps, raw):
    z_dim = eps.shape[1]
    bf = lambda a: a.astype(jnp.bfloat16).astype(jnp.float32)
    w = {k: (bf(v) if k.startswith("w") else v) for k, v in raw.items()}

    yx = bf(jnp.concatenate([y, x], axis=1))
    h1 = jnp.maximum(yx @ w["w1"] + w["b1"], 0.0)
    h2 = jnp.maximum(bf(h1) @ w["w2"] + w["b2"], 0.0)
    h3 = jnp.maximum(bf(h2) @ w["w3"] + w["b3"], 0.0)
    zo = bf(h3) @ w["w4"] + w["b4"]
    z_mu = zo[:, :z_dim]
    z_lv = jnp.clip(zo[:, z_dim:], -5.0, 2.0)
    z = z_mu + eps * jnp.exp(z_lv)

    d1 = jnp.maximum(bf(z) @ w["w5"][:z_dim] + bf(x) @ w["w5"][z_dim:] + w["b5"], 0.0)
    d2 = jnp.maximum(bf(d1) @ w["w6"] + w["b6"], 0.0)
    d3 = jnp.maximum(bf(d2) @ w["w7"] + w["b7"], 0.0)
    yo = bf(d3) @ w["w8"] + w["b8"]
    y_pred = yo[:, 1:]
    y_lv = jnp.clip(yo[:, 0:1], -5.0, 2.0)
    return y_pred, y_lv, z_mu, z_lv, z


if __name__ == "__main__":
    # Small shapes consistent with the module: x = (B, s_dim) exploration state,
    # y = (B, input_dim) observation. (For real throughput, batch B >= 128.)
    B, input_dim, z_dim, s_dim, hidden_dim = 8, 16, 8, 4, 32

    key = jax.random.PRNGKey(0)
    k_param, k_x, k_y, k_eps = jax.random.split(key, 4)

    raw = make_vae_params(k_param, input_dim, z_dim, s_dim, hidden_dim)
    w_all, b_all = pack_vae_params(raw, input_dim, z_dim, s_dim, hidden_dim)

    x = jax.random.normal(k_x, (B, s_dim), jnp.float32)
    y = jax.random.normal(k_y, (B, input_dim), jnp.float32)
    eps = jax.random.normal(k_eps, (B, z_dim), jnp.float32)  # torch.randn_like glue

    outs = vae_forward_pallas(x, y, eps, w_all, b_all)
    outs = jax.block_until_ready(outs)

    refs = vae_forward_ref(x, y, eps, raw)
    names = ["y_pred", "y_logvar", "z_mu", "z_logvar", "z_samples"]
    for name, o, r in zip(names, outs, refs):
        assert o.shape == r.shape, (name, o.shape, r.shape)
        err = float(jnp.max(jnp.abs(o - r)))
        assert jnp.allclose(o, r, atol=1e-3, rtol=1e-3), (name, err)

    print("KERNEL_OK")
</pallas_src>

<mosaic_0001>
module attributes {stable_mosaic.version = 11 : i64} {
  func.func @_vae_kernel(%arg0: memref<8x32xbf16, #tpu.memory_space<vmem>>, %arg1: memref<8x8xf32, #tpu.memory_space<vmem>>, %arg2: memref<9x32x32xbf16, #tpu.memory_space<vmem>>, %arg3: memref<8x32xf32, #tpu.memory_space<vmem>>, %arg4: memref<8x32xf32, #tpu.memory_space<vmem>>, %arg5: memref<8x8xf32, #tpu.memory_space<vmem>>, %arg6: memref<8x32xf32, #tpu.memory_space<vmem>>) attributes {dimension_semantics = [], scalar_prefetch = 0 : i64, scratch_operands = 0 : i64, tpu.core_type = #tpu.core_type<tc>} {
    %c0 = arith.constant 0 : index
    %c0_0 = arith.constant 0 : index
    %0 = vector.load %arg0[%c0, %c0_0] : memref<8x32xbf16, #tpu.memory_space<vmem>>, vector<8x32xbf16>
    %c0_1 = arith.constant 0 : index
    %c0_2 = arith.constant 0 : index
    %1 = vector.load %arg3[%c0_1, %c0_2] : memref<8x32xf32, #tpu.memory_space<vmem>>, vector<8x32xf32>
    %c0_3 = arith.constant 0 : index
    %c0_4 = arith.constant 0 : index
    %c0_5 = arith.constant 0 : index
    %2 = vector.load %arg2[%c0_3, %c0_4, %c0_5] : memref<9x32x32xbf16, #tpu.memory_space<vmem>>, vector<1x32x32xbf16>
    %3 = vector.shape_cast %2 : vector<1x32x32xbf16> to vector<32x32xbf16>
    %cst = arith.constant dense<0.000000e+00> : vector<8x32xf32>
    %4 = tpu.matmul %0, %3, %cst {dimension_numbers = #tpu.dot_dimension_numbers<[1], [0], [0], [1], [0, 0, 1, 1], [], []>} : vector<8x32xbf16>, vector<32x32xbf16>, vector<8x32xf32> -> vector<8x32xf32>
    %5 = vector.extract_strided_slice %1 {offsets = [0, 0], sizes = [1, 32], strides = [1, 1]} : vector<8x32xf32> to vector<1x32xf32>
    %6 = vector.broadcast %5 : vector<1x32xf32> to vector<8x32xf32>
    %7 = arith.addf %4, %6 : vector<8x32xf32>
    %cst_6 = arith.constant 0.000000e+00 : f32
    %8 = vector.broadcast %cst_6 : f32 to vector<8x32xf32>
    %9 = arith.maximumf %7, %8 : vector<8x32xf32>
    %10 = arith.truncf %9 : vector<8x32xf32> to vector<8x32xbf16>
    %c1 = arith.constant 1 : index
    %c0_7 = arith.constant 0 : index
    %c0_8 = arith.constant 0 : index
    %11 = vector.load %arg2[%c1, %c0_7, %c0_8] : memref<9x32x32xbf16, #tpu.memory_space<vmem>>, vector<1x32x32xbf16>
    %12 = vector.shape_cast %11 : vector<1x32x32xbf16> to vector<32x32xbf16>
    %cst_9 = arith.constant dense<0.000000e+00> : vector<8x32xf32>
    %13 = tpu.matmul %10, %12, %cst_9 {dimension_numbers = #tpu.dot_dimension_numbers<[1], [0], [0], [1], [0, 0, 1, 1], [], []>} : vector<8x32xbf16>, vector<32x32xbf16>, vector<8x32xf32> -> vector<8x32xf32>
    %14 = vector.extract_strided_slice %1 {offsets = [1, 0], sizes = [1, 32], strides = [1, 1]} : vector<8x32xf32> to vector<1x32xf32>
    %15 = vector.broadcast %14 : vector<1x32xf32> to vector<8x32xf32>
    %16 = arith.addf %13, %15 : vector<8x32xf32>
    %cst_10 = arith.constant 0.000000e+00 : f32
    %17 = vector.broadcast %cst_10 : f32 to vector<8x32xf32>
    %18 = arith.maximumf %16, %17 : vector<8x32xf32>
    %19 = arith.truncf %18 : vector<8x32xf32> to vector<8x32xbf16>
    %c2 = arith.constant 2 : index
    %c0_11 = arith.constant 0 : index
    %c0_12 = arith.constant 0 : index
    %20 = vector.load %arg2[%c2, %c0_11, %c0_12] : memref<9x32x32xbf16, #tpu.memory_space<vmem>>, vector<1x32x32xbf16>
    %21 = vector.shape_cast %20 : vector<1x32x32xbf16> to vector<32x32xbf16>
    %cst_13 = arith.constant dense<0.000000e+00> : vector<8x32xf32>
    %22 = tpu.matmul %19, %21, %cst_13 {dimension_numbers = #tpu.dot_dimension_numbers<[1], [0], [0], [1], [0, 0, 1, 1], [], []>} : vector<8x32xbf16>, vector<32x32xbf16>, vector<8x32xf32> -> vector<8x32xf32>
    %23 = vector.extract_strided_slice %1 {offsets = [2, 0], sizes = [1, 32], strides = [1, 1]} : vector<8x32xf32> to vector<1x32xf32>
    %24 = vector.broadcast %23 : vector<1x32xf32> to vector<8x32xf32>
    %25 = arith.addf %22, %24 : vector<8x32xf32>
    %cst_14 = arith.constant 0.000000e+00 : f32
    %26 = vector.broadcast %cst_14 : f32 to vector<8x32xf32>
    %27 = arith.maximumf %25, %26 : vector<8x32xf32>
    %28 = arith.truncf %27 : vector<8x32xf32> to vector<8x32xbf16>
    %c3 = arith.constant 3 : index
    %c0_15 = arith.constant 0 : index
    %c0_16 = arith.constant 0 : index
    %29 = vector.load %arg2[%c3, %c0_15, %c0_16] : memref<9x32x32xbf16, #tpu.memory_space<vmem>>, vector<1x32x32xbf16>
    %30 = vector.shape_cast %29 : vector<1x32x32xbf16> to vector<32x32xbf16>
    %cst_17 = arith.constant dense<0.000000e+00> : vector<8x32xf32>
    %31 = tpu.matmul %28, %30, %cst_17 {dimension_numbers = #tpu.dot_dimension_numbers<[1], [0], [0], [1], [0, 0, 1, 1], [], []>} : vector<8x32xbf16>, vector<32x32xbf16>, vector<8x32xf32> -> vector<8x32xf32>
    %32 = vector.extract_strided_slice %1 {offsets = [3, 0], sizes = [1, 32], strides = [1, 1]} : vector<8x32xf32> to vector<1x32xf32>
    %33 = vector.broadcast %32 : vector<1x32xf32> to vector<8x32xf32>
    %34 = arith.addf %31, %33 : vector<8x32xf32>
    %35 = tpu.iota {dimensions = array<i32: 1>} : vector<8x32xi32>
    %c8_i32 = arith.constant 8 : i32
    %36 = vector.broadcast %c8_i32 : i32 to vector<8x32xi32>
    %37 = arith.cmpi sge, %35, %36 : vector<8x32xi32>
    %c16_i32 = arith.constant 16 : i32
    %38 = vector.broadcast %c16_i32 : i32 to vector<8x32xi32>
    %39 = arith.cmpi slt, %35, %38 : vector<8x32xi32>
    %40 = arith.andi %37, %39 : vector<8x32xi1>
    %cst_18 = arith.constant -5.000000e+00 : f32
    %cst_19 = arith.constant 2.000000e+00 : f32
    %41 = vector.broadcast %cst_18 : f32 to vector<8x32xf32>
    %42 = arith.maximumf %41, %34 : vector<8x32xf32>
    %43 = vector.broadcast %cst_19 : f32 to vector<8x32xf32>
    %44 = arith.minimumf %43, %42 : vector<8x32xf32>
    %45 = arith.select %40, %44, %34 : vector<8x32xi1>, vector<8x32xf32>
    %46 = vector.extract_strided_slice %45 {offsets = [0, 0], sizes = [8, 8], strides = [1, 1]} : vector<8x32xf32> to vector<8x8xf32>
    %47 = vector.extract_strided_slice %45 {offsets = [0, 8], sizes = [8, 8], strides = [1, 1]} : vector<8x32xf32> to vector<8x8xf32>
    %c0_20 = arith.constant 0 : index
    %c0_21 = arith.constant 0 : index
    %48 = vector.load %arg1[%c0_20, %c0_21] : memref<8x8xf32, #tpu.memory_space<vmem>>, vector<8x8xf32>
    %49 = math.exp %47 : vector<8x8xf32>
    %50 = arith.mulf %48, %49 : vector<8x8xf32>
    %51 = arith.addf %46, %50 : vector<8x8xf32>
    %c4 = arith.constant 4 : index
    %c0_22 = arith.constant 0 : index
    %c0_23 = arith.constant 0 : index
    %52 = vector.load %arg2[%c4, %c0_22, %c0_23] : memref<9x32x32xbf16, #tpu.memory_space<vmem>>, vector<1x32x32xbf16>
    %53 = vector.shape_cast %52 : vector<1x32x32xbf16> to vector<32x32xbf16>
    %54 = vector.extract_strided_slice %53 {offsets = [0, 0], sizes = [8, 32], strides = [1, 1]} : vector<32x32xbf16> to vector<8x32xbf16>
    %55 = arith.truncf %51 : vector<8x8xf32> to vector<8x8xbf16>
    %cst_24 = arith.constant dense<0.000000e+00> : vector<8x32xf32>
    %56 = tpu.matmul %55, %54, %cst_24 {dimension_numbers = #tpu.dot_dimension_numbers<[1], [0], [0], [1], [0, 0, 1, 1], [], []>} : vector<8x8xbf16>, vector<8x32xbf16>, vector<8x32xf32> -> vector<8x32xf32>
    %c5 = arith.constant 5 : index
    %c0_25 = arith.constant 0 : index
    %c0_26 = arith.constant 0 : index
    %57 = vector.load %arg2[%c5, %c0_25, %c0_26] : memref<9x32x32xbf16, #tpu.memory_space<vmem>>, vector<1x32x32xbf16>
    %58 = vector.shape_cast %57 : vector<1x32x32xbf16> to vector<32x32xbf16>
    %cst_27 = arith.constant dense<0.000000e+00> : vector<8x32xf32>
    %59 = tpu.matmul %0, %58, %cst_27 {dimension_numbers = #tpu.dot_dimension_numbers<[1], [0], [0], [1], [0, 0, 1, 1], [], []>} : vector<8x32xbf16>, vector<32x32xbf16>, vector<8x32xf32> -> vector<8x32xf32>
    %60 = arith.addf %56, %59 : vector<8x32xf32>
    %61 = vector.extract_strided_slice %1 {offsets = [4, 0], sizes = [1, 32], strides = [1, 1]} : vector<8x32xf32> to vector<1x32xf32>
    %62 = vector.broadcast %61 : vector<1x32xf32> to vector<8x32xf32>
    %63 = arith.addf %60, %62 : vector<8x32xf32>
    %cst_28 = arith.constant 0.000000e+00 : f32
    %64 = vector.broadcast %cst_28 : f32 to vector<8x32xf32>
    %65 = arith.maximumf %63, %64 : vector<8x32xf32>
    %66 = arith.truncf %65 : vector<8x32xf32> to vector<8x32xbf16>
    %c6 = arith.constant 6 : index
    %c0_29 = arith.constant 0 : index
    %c0_30 = arith.constant 0 : index
    %67 = vector.load %arg2[%c6, %c0_29, %c0_30] : memref<9x32x32xbf16, #tpu.memory_space<vmem>>, vector<1x32x32xbf16>
    %68 = vector.shape_cast %67 : vector<1x32x32xbf16> to vector<32x32xbf16>
    %cst_31 = arith.constant dense<0.000000e+00> : vector<8x32xf32>
    %69 = tpu.matmul %66, %68, %cst_31 {dimension_numbers = #tpu.dot_dimension_numbers<[1], [0], [0], [1], [0, 0, 1, 1], [], []>} : vector<8x32xbf16>, vector<32x32xbf16>, vector<8x32xf32> -> vector<8x32xf32>
    %70 = vector.extract_strided_slice %1 {offsets = [5, 0], sizes = [1, 32], strides = [1, 1]} : vector<8x32xf32> to vector<1x32xf32>
    %71 = vector.broadcast %70 : vector<1x32xf32> to vector<8x32xf32>
    %72 = arith.addf %69, %71 : vector<8x32xf32>
    %cst_32 = arith.constant 0.000000e+00 : f32
    %73 = vector.broadcast %cst_32 : f32 to vector<8x32xf32>
    %74 = arith.maximumf %72, %73 : vector<8x32xf32>
    %75 = arith.truncf %74 : vector<8x32xf32> to vector<8x32xbf16>
    %c7 = arith.constant 7 : index
    %c0_33 = arith.constant 0 : index
    %c0_34 = arith.constant 0 : index
    %76 = vector.load %arg2[%c7, %c0_33, %c0_34] : memref<9x32x32xbf16, #tpu.memory_space<vmem>>, vector<1x32x32xbf16>
    %77 = vector.shape_cast %76 : vector<1x32x32xbf16> to vector<32x32xbf16>
    %cst_35 = arith.constant dense<0.000000e+00> : vector<8x32xf32>
    %78 = tpu.matmul %75, %77, %cst_35 {dimension_numbers = #tpu.dot_dimension_numbers<[1], [0], [0], [1], [0, 0, 1, 1], [], []>} : vector<8x32xbf16>, vector<32x32xbf16>, vector<8x32xf32> -> vector<8x32xf32>
    %79 = vector.extract_strided_slice %1 {offsets = [6, 0], sizes = [1, 32], strides = [1, 1]} : vector<8x32xf32> to vector<1x32xf32>
    %80 = vector.broadcast %79 : vector<1x32xf32> to vector<8x32xf32>
    %81 = arith.addf %78, %80 : vector<8x32xf32>
    %cst_36 = arith.constant 0.000000e+00 : f32
    %82 = vector.broadcast %cst_36 : f32 to vector<8x32xf32>
    %83 = arith.maximumf %81, %82 : vector<8x32xf32>
    %84 = arith.truncf %83 : vector<8x32xf32> to vector<8x32xbf16>
    %c8 = arith.constant 8 : index
    %c0_37 = arith.constant 0 : index
    %c0_38 = arith.constant 0 : index
    %85 = vector.load %arg2[%c8, %c0_37, %c0_38] : memref<9x32x32xbf16, #tpu.memory_space<vmem>>, vector<1x32x32xbf16>
    %86 = vector.shape_cast %85 : vector<1x32x32xbf16> to vector<32x32xbf16>
    %cst_39 = arith.constant dense<0.000000e+00> : vector<8x32xf32>
    %87 = tpu.matmul %84, %86, %cst_39 {dimension_numbers = #tpu.dot_dimension_numbers<[1], [0], [0], [1], [0, 0, 1, 1], [], []>} : vector<8x32xbf16>, vector<32x32xbf16>, vector<8x32xf32> -> vector<8x32xf32>
    %88 = vector.extract_strided_slice %1 {offsets = [7, 0], sizes = [1, 32], strides = [1, 1]} : vector<8x32xf32> to vector<1x32xf32>
    %89 = vector.broadcast %88 : vector<1x32xf32> to vector<8x32xf32>
    %90 = arith.addf %87, %89 : vector<8x32xf32>
    %c0_i32 = arith.constant 0 : i32
    %91 = vector.broadcast %c0_i32 : i32 to vector<8x32xi32>
    %92 = arith.cmpi eq, %35, %91 : vector<8x32xi32>
    %cst_40 = arith.constant -5.000000e+00 : f32
    %cst_41 = arith.constant 2.000000e+00 : f32
    %93 = vector.broadcast %cst_40 : f32 to vector<8x32xf32>
    %94 = arith.maximumf %93, %90 : vector<8x32xf32>
    %95 = vector.broadcast %cst_41 : f32 to vector<8x32xf32>
    %96 = arith.minimumf %95, %94 : vector<8x32xf32>
    %97 = arith.select %92, %96, %90 : vector<8x32xi1>, vector<8x32xf32>
    %c0_42 = arith.constant 0 : index
    %c0_43 = arith.constant 0 : index
    %98 = vector.load %arg4[%c0_42, %c0_43] : memref<8x32xf32, #tpu.memory_space<vmem>>, vector<8x32xf32>
    tpu.vector_store %arg4[%c0_42, %c0_43], %45 {strides = array<i32>} : memref<8x32xf32, #tpu.memory_space<vmem>>, vector<8x32xf32>,
    %c0_44 = arith.constant 0 : index
    %c0_45 = arith.constant 0 : index
    %99 = vector.load %arg5[%c0_44, %c0_45] : memref<8x8xf32, #tpu.memory_space<vmem>>, vector<8x8xf32>
    tpu.vector_store %arg5[%c0_44, %c0_45], %51 {strides = array<i32>} : memref<8x8xf32, #tpu.memory_space<vmem>>, vector<8x8xf32>,
    %c0_46 = arith.constant 0 : index
    %c0_47 = arith.constant 0 : index
    %100 = vector.load %arg6[%c0_46, %c0_47] : memref<8x32xf32, #tpu.memory_space<vmem>>, vector<8x32xf32>
    tpu.vector_store %arg6[%c0_46, %c0_47], %97 {strides = array<i32>} : memref<8x32xf32, #tpu.memory_space<vmem>>, vector<8x32xf32>,
    return
  }
}

</mosaic_0001>

<llo_original>
// kernel: vae_forward_pallas.1
$region0: #{vae_forward_pallas.1}
  #allocation0 [shape = 'u32[]', space=smem, size = 0x4, offset = 0x4, fixed_abs, tag = 'smem constant byte address 0x4 - core index']
  #allocation1 [shape = 'u32[72,128]{1,0:T(1,128)}', space=vmem, size = 0x9000, scoped, tag = 'internal scratch']
  %s0 = inlined_call_operand.vmem [shape: bf16[8,32], index: 0, kind: input, shape index: {}]
  %s1 = inlined_call_operand.vmem [shape: f32[8,8], index: 1, kind: input, shape index: {}]
  %s2 = inlined_call_operand.hbm [shape: bf16[9,32,32], index: 2, kind: input, shape index: {}]
  %s3 = inlined_call_operand.vmem [shape: f32[8,32], index: 3, kind: input, shape index: {}]
  %s4 = inlined_call_operand.vmem [shape: f32[8,32], index: 4, kind: output, shape index: {0}]
  %s5 = inlined_call_operand.hbm [shape: f32[8,8], index: 5, kind: output, shape index: {1}]
  %s6 = inlined_call_operand.vmem [shape: f32[8,32], index: 6, kind: output, shape index: {2}]
  %7 = xla_tuple %s4, %s5, %s6
  %s8 = sld [smem:[#allocation0]]
  $region46: #{vae_forward_pallas.1} parent=0
    _
  %s10 = ssub.s32 1, %s8
  %s11 = scalar_select 0, %s10, %s8
  $region1: #{vae_forward_pallas.1} parent=0
    #allocation2 [shape = 'u8[73728]{0}', space=vmem, size = 0x12000, scoped, tag = 'input window, operand 2, single buffered']
    #allocation3 [shape = 's32[1]{0}', space=sflag, size = 0x4, scoped, tag = 'scoped memory for vae_forward_pallas.1']
    #allocation4 [shape = 's32[1]{0}', space=sflag, size = 0x4, scoped, tag = 'scoped memory for vae_forward_pallas.1']
    #allocation5 [shape = 'u8[4096]{0}', space=vmem, size = 0x1000, scoped, tag = 'output window, operand 1, single buffered']
    %12 = vsyncpa [#allocation3], 0
    %13 = vsyncpa [#allocation4], 0
    // Predicated region
    $region2: #{vae_forward_pallas.1} parent=1 // pred_check
      _
    $region3: #{vae_forward_pallas.1} parent=1 // pred_check_branch
      %15 = sbr.rel (0) target = $region5
    $region4: #{vae_forward_pallas.1} parent=1 // pred_region
      _
    $region5: #{vae_forward_pallas.1} parent=1 // pred_fallthru
      _
    // Predicated region
    $region6: #{vae_forward_pallas.1} parent=1 // pred_check
      _
    $region7: #{vae_forward_pallas.1} parent=1 // pred_check_branch
      %17 = sbr.rel (0) target = $region9
    $region8: #{vae_forward_pallas.1} parent=1 // pred_region
      _
    $region9: #{vae_forward_pallas.1} parent=1 // pred_fallthru
      _
    // Predicated region
    $region10: #{vae_forward_pallas.1} parent=1 // pred_check
      _
    $region11: #{vae_forward_pallas.1} parent=1 // pred_check_branch
      %19 = sbr.rel (0) target = $region13
    $region12: #{vae_forward_pallas.1} parent=1 // pred_region
      %21 = vsyncadd [#allocation3], 0
      %s22 = sshll.u32 %s2, 4
      %s23 = int_to_ptr.hbm [resolvable:$true] %s22
      %s24 = sshll.u32 [#allocation2], 4
      %s25 = int_to_ptr.vmem [resolvable:$true] %s24
      %30 = dma.hbm_to_vmem [thread:$0]  %s23, 2304, %s25, [#allocation3], 64, 64, 4
    $region13: #{vae_forward_pallas.1} parent=1 // pred_fallthru
      _
    // Predicated region
    $region14: #{vae_forward_pallas.1} parent=1 // pred_check
      _
    $region15: #{vae_forward_pallas.1} parent=1 // pred_check_branch
      %32 = sbr.rel (0) target = $region17
    $region16: #{vae_forward_pallas.1} parent=1 // pred_region
      _
    $region17: #{vae_forward_pallas.1} parent=1 // pred_fallthru
      _
    // Predicated region
    $region18: #{vae_forward_pallas.1} parent=1 // pred_check
      _
    $region19: #{vae_forward_pallas.1} parent=1 // pred_check_branch
      %34 = sbr.rel (0) target = $region21
    $region20: #{vae_forward_pallas.1} parent=1 // pred_region
      %36 = dma.done [#allocation3], 2304
    $region21: #{vae_forward_pallas.1} parent=1 // pred_fallthru
      _
    %v38 = vld [vmem:[%s0] sm:$0xf]
    %v39 = vld [vmem:[%s3] sm:$0xff]
    %v40 = vld [vmem:[#allocation2] sm:$0xf]
    %v41 = vld [vmem:[#allocation2 + $0x4] sm:$0xf]
    %v42 = vld [vmem:[#allocation2 + $0x8] sm:$0xf]
    %v43 = vld [vmem:[#allocation2 + $0xc] sm:$0xf]
    %v44 = vperm.slane %v39, 0
    %v49 = vunpack.c.l.b16 %v40
    %v50 = vunpack.c.l.b16 %v41
    %v51 = vunpack.c.l.b16 %v42
    %v52 = vunpack.c.l.b16 %v43
    %v53 = vpack.c.b16 %v50, %v49
    %v54 = vpack.c.b16 %v52, %v51
    %vm57 = vcmask 261120
    %v59 = vsel %vm57, %v38, 0
    %61 = vmatpush.bf16.msra.mxu0 0
    %62 = vmatpush.bf16.msra.mxu0 0
    %63 = vmatpush.bf16.msra.mxu0 0
    %64 = vmatpush.bf16.msra.mxu0 0
    %65 = vmatpush.bf16.msra.mxu0 0
    %66 = vmatpush.bf16.msra.mxu0 0
    %67 = vmatpush.bf16.msra.mxu0 %v54
    %68 = vmatpush.bf16.msra.mxu0 %v53
    %69 = vmatmul.bf16.gmra.mxu0 %v59
    %v70 = vpop.f32.mrf.mxu0
    %v71 = vadd.f32 %v44, %v70
    %v72 = vpop.f32.mrf.mxu0
    %73 = vdwg.mxu0
    %v74 = vmax.f32 %v71, 0.0
    %v75 = vpack.c.bf16 %v74, %v74
    %s76 = scalar_lea.vmem [#allocation2], 16
    %v77 = vld [vmem:[%s76] sm:$0xf]
    %v78 = vld [vmem:[%s76 + $0x4] sm:$0xf]
    %v79 = vld [vmem:[%s76 + $0x8] sm:$0xf]
    %v80 = vld [vmem:[%s76 + $0xc] sm:$0xf]
    %v81 = vperm.slane %v39, 1
    %v86 = vunpack.c.l.b16 %v77
    %v87 = vunpack.c.l.b16 %v78
    %v88 = vunpack.c.l.b16 %v79
    %v89 = vunpack.c.l.b16 %v80
    %v90 = vpack.c.b16 %v87, %v86
    %v91 = vpack.c.b16 %v89, %v88
    %v95 = vsel %vm57, %v75, 0
    %97 = vmatpush.bf16.msra.mxu0 0
    %98 = vmatpush.bf16.msra.mxu0 0
    %99 = vmatpush.bf16.msra.mxu0 0
    %100 = vmatpush.bf16.msra.mxu0 0
    %101 = vmatpush.bf16.msra.mxu0 0
    %102 = vmatpush.bf16.msra.mxu0 0
    %103 = vmatpush.bf16.msra.mxu0 %v91
    %104 = vmatpush.bf16.msra.mxu0 %v90
    %105 = vmatmul.bf16.gmra.mxu0 %v95
    %v106 = vpop.f32.mrf.mxu0
    %v107 = vadd.f32 %v81, %v106
    %v108 = vpop.f32.mrf.mxu0
    %109 = vdwg.mxu0
    %v110 = vmax.f32 %v107, 0.0
    %v111 = vpack.c.bf16 %v110, %v110
    %s112 = scalar_lea.vmem [#allocation2], 32
    %v113 = vld [vmem:[%s112] sm:$0xf]
    %v114 = vld [vmem:[%s112 + $0x4] sm:$0xf]
    %v115 = vld [vmem:[%s112 + $0x8] sm:$0xf]
    %v116 = vld [vmem:[%s112 + $0xc] sm:$0xf]
    %v117 = vperm.slane %v39, 2
    %v122 = vunpack.c.l.b16 %v113
    %v123 = vunpack.c.l.b16 %v114
    %v124 = vunpack.c.l.b16 %v115
    %v125 = vunpack.c.l.b16 %v116
    %v126 = vpack.c.b16 %v123, %v122
    %v127 = vpack.c.b16 %v125, %v124
    %v131 = vsel %vm57, %v111, 0
    %133 = vmatpush.bf16.msra.mxu0 0
    %134 = vmatpush.bf16.msra.mxu0 0
    %135 = vmatpush.bf16.msra.mxu0 0
    %136 = vmatpush.bf16.msra.mxu0 0
    %137 = vmatpush.bf16.msra.mxu0 0
    %138 = vmatpush.bf16.msra.mxu0 0
    %139 = vmatpush.bf16.msra.mxu0 %v127
    %140 = vmatpush.bf16.msra.mxu0 %v126
    %141 = vmatmul.bf16.gmra.mxu0 %v131
    %v142 = vpop.f32.mrf.mxu0
    %v143 = vadd.f32 %v117, %v142
    %v144 = vpop.f32.mrf.mxu0
    %145 = vdwg.mxu0
    %v146 = vmax.f32 %v143, 0.0
    %v147 = vpack.c.bf16 %v146, %v146
    %s148 = scalar_lea.vmem [#allocation2], 48
    %v149 = vld [vmem:[%s148] sm:$0xf]
    %v150 = vld [vmem:[%s148 + $0x4] sm:$0xf]
    %v151 = vld [vmem:[%s148 + $0x8] sm:$0xf]
    %v152 = vld [vmem:[%s148 + $0xc] sm:$0xf]
    %v153 = vperm.slane %v39, 3
    %v158 = vunpack.c.l.b16 %v149
    %v159 = vunpack.c.l.b16 %v150
    %v160 = vunpack.c.l.b16 %v151
    %v161 = vunpack.c.l.b16 %v152
    %v162 = vpack.c.b16 %v159, %v158
    %v163 = vpack.c.b16 %v161, %v160
    %v167 = vsel %vm57, %v147, 0
    %169 = vmatpush.bf16.msra.mxu0 0
    %170 = vmatpush.bf16.msra.mxu0 0
    %171 = vmatpush.bf16.msra.mxu0 0
    %172 = vmatpush.bf16.msra.mxu0 0
    %173 = vmatpush.bf16.msra.mxu0 0
    %174 = vmatpush.bf16.msra.mxu0 0
    %175 = vmatpush.bf16.msra.mxu0 %v163
    %176 = vmatpush.bf16.msra.mxu0 %v162
    %177 = vmatmul.bf16.gmra.mxu0 %v167
    %v178 = vpop.f32.mrf.mxu0
    %v179 = vadd.f32 %v153, %v178
    %v180 = vpop.f32.mrf.mxu0
    %181 = vdwg.mxu0
    %v182 = vlaneseq
    %v183 = vand.u32 %v182, 127
    %vm184 = vcmp.ge.s32.totalorder %v183, 8
    %vm185 = vcmp.lt.s32.totalorder %v183, 16
    %vm186 = vmand %vm184, %vm185
    %v187 = vmax.f32 %v179, -5.0
    %v188 = vmin.f32 %v187, 2.0
    %v189 = vsel %vm186, %v188, %v179
    %v190 = vld [vmem:[%s1] sm:$0xff]
    %v191 = vmul.f32 %v189, 1.442695
    %v192 = vpow.pop %v191
    %194 = vrot.lane.b32.xlu0 %v192, 120
    %v195 = vpop.permute.xlu0 %194
    %v197 = vmul.f32 %v190, %v195
    %v198 = vadd.f32 %v189, %v197
    %s199 = scalar_lea.vmem [#allocation2], 64
    %v200 = vld [vmem:[%s199] sm:$0xf]
    %v201 = vpack.c.bf16 %v198, %v198
    %s202 = scalar_lea.vmem [#allocation2], 80
    %v203 = vld [vmem:[%s202] sm:$0xf]
    %v204 = vld [vmem:[%s202 + $0x4] sm:$0xf]
    %v205 = vld [vmem:[%s202 + $0x8] sm:$0xf]
    %v206 = vld [vmem:[%s202 + $0xc] sm:$0xf]
    %v211 = vunpack.c.l.b16 %v203
    %v212 = vunpack.c.l.b16 %v204
    %v213 = vunpack.c.l.b16 %v205
    %v214 = vunpack.c.l.b16 %v206
    %v215 = vpack.c.b16 %v212, %v211
    %v216 = vpack.c.b16 %v214, %v213
    %219 = vmatpush.bf16.msra.mxu0 0
    %220 = vmatpush.bf16.msra.mxu0 0
    %221 = vmatpush.bf16.msra.mxu0 0
    %222 = vmatpush.bf16.msra.mxu0 0
    %223 = vmatpush.bf16.msra.mxu0 0
    %224 = vmatpush.bf16.msra.mxu0 0
    %225 = vmatpush.bf16.msra.mxu0 %v216
    %226 = vmatpush.bf16.msra.mxu0 %v215
    %227 = vmatmul.bf16.gmra.mxu0 %v59
    %v228 = vpop.f32.mrf.mxu0
    %v229 = vadd.f32 0.0, %v228
    %v230 = vpop.f32.mrf.mxu0
    %231 = vdwg.mxu0
    %vm232 = vcmask 64512
    %v234 = vsel %vm232, %v201, 0
    %vm236 = vcmask 1043456
    %v238 = vsel %vm236, %v200, 0
    %240 = vmatpush.bf16.msra.mxu0 0
    %241 = vmatpush.bf16.msra.mxu0 0
    %242 = vmatpush.bf16.msra.mxu0 0
    %243 = vmatpush.bf16.msra.mxu0 0
    %244 = vmatpush.bf16.msra.mxu0 0
    %245 = vmatpush.bf16.msra.mxu0 0
    %246 = vmatpush.bf16.msra.mxu0 0
    %247 = vmatpush.bf16.msra.mxu0 %v238
    %248 = vmatmul.bf16.gmra.mxu0 %v234
    %v249 = vpop.f32.mrf.mxu0
    %v250 = vadd.f32 %v229, %v249
    %v251 = vpop.f32.mrf.mxu0
    %252 = vdwg.mxu0
    %v253 = vperm.slane %v39, 4
    %v254 = vadd.f32 %v250, %v253
    %v255 = vmax.f32 %v254, 0.0
    %v256 = vpack.c.bf16 %v255, %v255
    %s257 = scalar_lea.vmem [#allocation2], 96
    %v258 = vld [vmem:[%s257] sm:$0xf]
    %v259 = vld [vmem:[%s257 + $0x4] sm:$0xf]
    %v260 = vld [vmem:[%s257 + $0x8] sm:$0xf]
    %v261 = vld [vmem:[%s257 + $0xc] sm:$0xf]
    %v262 = vperm.slane %v39, 5
    %v267 = vunpack.c.l.b16 %v258
    %v268 = vunpack.c.l.b16 %v259
    %v269 = vunpack.c.l.b16 %v260
    %v270 = vunpack.c.l.b16 %v261
    %v271 = vpack.c.b16 %v268, %v267
    %v272 = vpack.c.b16 %v270, %v269
    %v276 = vsel %vm57, %v256, 0
    %278 = vmatpush.bf16.msra.mxu0 0
    %279 = vmatpush.bf16.msra.mxu0 0
    %280 = vmatpush.bf16.msra.mxu0 0
    %281 = vmatpush.bf16.msra.mxu0 0
    %282 = vmatpush.bf16.msra.mxu0 0
    %283 = vmatpush.bf16.msra.mxu0 0
    %284 = vmatpush.bf16.msra.mxu0 %v272
    %285 = vmatpush.bf16.msra.mxu0 %v271
    %286 = vmatmul.bf16.gmra.mxu0 %v276
    %v287 = vpop.f32.mrf.mxu0
    %v288 = vadd.f32 %v262, %v287
    %v289 = vpop.f32.mrf.mxu0
    %290 = vdwg.mxu0
    %v291 = vmax.f32 %v288, 0.0
    %v292 = vpack.c.bf16 %v291, %v291
    %s293 = scalar_lea.vmem [#allocation2], 112
    %v294 = vld [vmem:[%s293] sm:$0xf]
    %v295 = vld [vmem:[%s293 + $0x4] sm:$0xf]
    %v296 = vld [vmem:[%s293 + $0x8] sm:$0xf]
    %v297 = vld [vmem:[%s293 + $0xc] sm:$0xf]
    %v298 = vperm.slane %v39, 6
    %v303 = vunpack.c.l.b16 %v294
    %v304 = vunpack.c.l.b16 %v295
    %v305 = vunpack.c.l.b16 %v296
    %v306 = vunpack.c.l.b16 %v297
    %v307 = vpack.c.b16 %v304, %v303
    %v308 = vpack.c.b16 %v306, %v305
    %v312 = vsel %vm57, %v292, 0
    %314 = vmatpush.bf16.msra.mxu0 0
    %315 = vmatpush.bf16.msra.mxu0 0
    %316 = vmatpush.bf16.msra.mxu0 0
    %317 = vmatpush.bf16.msra.mxu0 0
    %318 = vmatpush.bf16.msra.mxu0 0
    %319 = vmatpush.bf16.msra.mxu0 0
    %320 = vmatpush.bf16.msra.mxu0 %v308
    %321 = vmatpush.bf16.msra.mxu0 %v307
    %322 = vmatmul.bf16.gmra.mxu0 %v312
    %v323 = vpop.f32.mrf.mxu0
    %v324 = vadd.f32 %v298, %v323
    %v325 = vpop.f32.mrf.mxu0
    %326 = vdwg.mxu0
    %v327 = vmax.f32 %v324, 0.0
    %v328 = vpack.c.bf16 %v327, %v327
    %s329 = scalar_lea.vmem [#allocation2], 128
    %v330 = vld [vmem:[%s329] sm:$0xf]
    %v331 = vld [vmem:[%s329 + $0x4] sm:$0xf]
    %v332 = vld [vmem:[%s329 + $0x8] sm:$0xf]
    %v333 = vld [vmem:[%s329 + $0xc] sm:$0xf]
    %v334 = vperm.slane %v39, 7
    %v339 = vunpack.c.l.b16 %v330
    %v340 = vunpack.c.l.b16 %v331
    %v341 = vunpack.c.l.b16 %v332
    %v342 = vunpack.c.l.b16 %v333
    %v343 = vpack.c.b16 %v340, %v339
    %v344 = vpack.c.b16 %v342, %v341
    %v348 = vsel %vm57, %v328, 0
    %350 = vmatpush.bf16.msra.mxu0 0
    %351 = vmatpush.bf16.msra.mxu0 0
    %352 = vmatpush.bf16.msra.mxu0 0
    %353 = vmatpush.bf16.msra.mxu0 0
    %354 = vmatpush.bf16.msra.mxu0 0
    %355 = vmatpush.bf16.msra.mxu0 0
    %356 = vmatpush.bf16.msra.mxu0 %v344
    %357 = vmatpush.bf16.msra.mxu0 %v343
    %358 = vmatmul.bf16.gmra.mxu0 %v348
    %v359 = vpop.f32.mrf.mxu0
    %v360 = vadd.f32 %v334, %v359
    %v361 = vpop.f32.mrf.mxu0
    %362 = vdwg.mxu0
    %vm363 = vcmp.eq.s32.totalorder %v183, 0
    %v364 = vmax.f32 %v360, -5.0
    %v365 = vmin.f32 %v364, 2.0
    %v366 = vsel %vm363, %v365, %v360
    %367 = vst.msk [vmem:[%s4] sm:$0xff] %vm57, %v189
    %368 = vst.msk [vmem:[#allocation5] sm:$0xff] %vm232, %v198
    %369 = vst.msk [vmem:[%s6] sm:$0xff] %vm57, %v366
    // Predicated region
    $region22: #{vae_forward_pallas.1} parent=1 // pred_check
      _
    $region23: #{vae_forward_pallas.1} parent=1 // pred_check_branch
      %371 = sbr.rel (0) target = $region25
    $region24: #{vae_forward_pallas.1} parent=1 // pred_region
      _
    $region25: #{vae_forward_pallas.1} parent=1 // pred_fallthru
      _
    // Predicated region
    $region26: #{vae_forward_pallas.1} parent=1 // pred_check
      _
    $region27: #{vae_forward_pallas.1} parent=1 // pred_check_branch
      %373 = sbr.rel (0) target = $region29
    $region28: #{vae_forward_pallas.1} parent=1 // pred_region
      %375 = vsyncadd [#allocation4], 0
      %s377 = sshll.u32 [#allocation5], 4
      %s378 = int_to_ptr.vmem [resolvable:$true] %s377
      %s379 = sshll.u32 %s5, 4
      %s380 = int_to_ptr.hbm [resolvable:$true] %s379
      %382 = dma.vmem_to_hbm [thread:$0]  %s378, 128, %s380, [#allocation4]
    $region29: #{vae_forward_pallas.1} parent=1 // pred_fallthru
      _
    // Predicated region
    $region30: #{vae_forward_pallas.1} parent=1 // pred_check
      _
    $region31: #{vae_forward_pallas.1} parent=1 // pred_check_branch
      %384 = sbr.rel (0) target = $region33
    $region32: #{vae_forward_pallas.1} parent=1 // pred_region
      _
    $region33: #{vae_forward_pallas.1} parent=1 // pred_fallthru
      _
    // Predicated region
    $region34: #{vae_forward_pallas.1} parent=1 // pred_check
      _
    $region35: #{vae_forward_pallas.1} parent=1 // pred_check_branch
      %386 = sbr.rel (0) target = $region37
    $region36: #{vae_forward_pallas.1} parent=1 // pred_region
      _
    $region37: #{vae_forward_pallas.1} parent=1 // pred_fallthru
      _
    // Predicated region
    $region38: #{vae_forward_pallas.1} parent=1 // pred_check
      _
    $region39: #{vae_forward_pallas.1} parent=1 // pred_check_branch
      %388 = sbr.rel (0) target = $region41
    $region40: #{vae_forward_pallas.1} parent=1 // pred_region
      %390 = dma.done [#allocation4], 128
    $region41: #{vae_forward_pallas.1} parent=1 // pred_fallthru
      _
    // Predicated region
    $region42: #{vae_forward_pallas.1} parent=1 // pred_check
      _
    $region43: #{vae_forward_pallas.1} parent=1 // pred_check_branch
      %392 = sbr.rel (0) target = $region45
    $region44: #{vae_forward_pallas.1} parent=1 // pred_region
      _
    $region45: #{vae_forward_pallas.1} parent=1 // pred_fallthru
      _
    %393 = vsyncpa [#allocation3], 1
    %394 = vsyncpa [#allocation4], 1

</llo_original>
